<compile_context>
chip_gen: v6e
topology: v6e:2x2x1
jax: 0.10.0
libtpu: 0.0.40
codegen_flags: <defaults>
</compile_context>

<pallas_src>
import math

import numpy as np
import jax
import jax.numpy as jnp
from jax.experimental import pallas as pl
from jax.experimental.pallas import tpu as pltpu

# ---------------- small config (shrunk but shape-consistent with the module) ----------------
B = 2                      # batch
MASK_SHAPE = (4, 4, 8)     # synthetic fMRI volume
L = 64                     # number of masked voxels (exactly half the volume)
HIDDEN = 32                # hidden_dim
RANK = 16                  # rank
ENC = 192                  # gaussian encoded_size (fourier feats = 2*ENC = 384)
ROI_DIM = 32               # roi_embed_dim
N_ROIS = 5
N_MLP = 4                  # n_mlp_layers
N_TOK = 8                  # n_fmri_tokens
TOK_DIM = 16               # token_dim
OUT_DIM = N_TOK * TOK_DIM  # 128 -> lane-dense output store
EPS = 1e-5                 # LayerNorm eps (PyTorch default)


def _gelu(x):
    # TODO(synk): PyTorch nn.GELU defaults to exact erf-GELU; tanh approximation
    # used here for guaranteed Mosaic lowering (~1e-3 relative difference).
    return jax.nn.gelu(x, approximate=True)


def _layernorm(x, g, b):
    mu = jnp.mean(x, axis=-1, keepdims=True)
    var = jnp.mean((x - mu) ** 2, axis=-1, keepdims=True)
    return (x - mu) * jax.lax.rsqrt(var + EPS) * g + b


def _bf16(x):
    return x.astype(jnp.bfloat16)


def _vmem_spec():
    return pl.BlockSpec(memory_space=pltpu.MemorySpace.VMEM)


# ---------------- setup-time kernel: static attention probabilities ----------------
# Everything here is input-independent (frozen weights + registered buffers):
# coords MLP on the precomputed Fourier slab, folded score projection, softmax
# over voxels.  Run once at setup / per weight update; result is cached.
def probs_kernel(enc_ref, w1_ref, w2_ref, wa_ref, b12_ref, add_ref, probs_ref):
    b12 = b12_ref[...]                                               # (1, 2*RANK) f32
    # coords_transform: Linear(384, R) -> GELU -> Linear(R, R) -> GELU
    h = jnp.dot(enc_ref[...], w1_ref[...],
                preferred_element_type=jnp.float32) + b12[:, :RANK]  # (L, R)
    h = _gelu(h)
    h = jnp.dot(_bf16(h), w2_ref[...],
                preferred_element_type=jnp.float32) + b12[:, RANK:]
    h = _gelu(h)
    # Folded tail: (Linear(R,R) -> region_feature_project -> query^T) collapsed
    # into one (R, HIDDEN) weight; static roi projection + folded bias added.
    s = jnp.dot(_bf16(h), wa_ref[...],
                preferred_element_type=jnp.float32) + add_ref[...]   # (L, HIDDEN)
    # softmax over voxels (axis 0), probs kept in (L, HIDDEN) orientation so the
    # forward kernel's voxels @ probs is a plain matmul (no transpose).
    m = jnp.max(s, axis=0, keepdims=True)
    e = jnp.exp(s - m)
    probs_ref[...] = e * pl.reciprocal(jnp.sum(e, axis=0, keepdims=True), approx=True)


def compute_attention_probs(setup):
    args = (setup["enc"], setup["w1"], setup["w2"], setup["w_a"],
            setup["b12"], setup["static_add"])
    return pl.pallas_call(
        probs_kernel,
        out_shape=jax.ShapeDtypeStruct((L, HIDDEN), jnp.float32),
        in_specs=[_vmem_spec() for _ in args],
        out_specs=_vmem_spec(),
    )(*args)


# ---------------- per-call forward kernel (hot path) ----------------
# voxels @ probs -> post LN+GELU -> 4 residual MLP blocks -> head.
# vecs layout (14, HIDDEN): row 0 post-LN gain, row 1 post-LN bias,
# rows 2..5 mlp biases, rows 6..9 mlp LN gains, rows 10..13 mlp LN biases.
def forward_kernel(vox_ref, probs_ref, vecs_ref, mlp_w_ref, head_w_ref, head_b_ref,
                   out_ref):
    vecs = vecs_ref[...]                                             # (14, HIDDEN) f32
    # neuro-informed attention readout: (B, L) @ (L, HIDDEN)
    x = jnp.dot(_bf16(vox_ref[...]), _bf16(probs_ref[...]),
                preferred_element_type=jnp.float32)                  # (B, HIDDEN)
    # neuro_informed_attn_post: LN -> GELU -> Dropout(0.5)=identity (eval)
    x = _gelu(_layernorm(x, vecs[0:1], vecs[1:2]))
    residual = x
    # residual MLP stack is sequential by construction -> static unroll
    for i in range(N_MLP):
        h = jnp.dot(_bf16(x), mlp_w_ref[i],
                    preferred_element_type=jnp.float32) + vecs[2 + i:3 + i]
        h = _gelu(_layernorm(h, vecs[6 + i:7 + i], vecs[10 + i:11 + i]))  # Dropout(0.15)=id
        x = h + residual
        residual = x
    out_ref[...] = (jnp.dot(_bf16(x), head_w_ref[...],
                            preferred_element_type=jnp.float32)
                    + head_b_ref[...])                               # (B, 128) lane-dense


def neuro_forward(voxels, probs, fwd):
    args = (voxels, probs, fwd["vecs32"], fwd["mlp_w"], fwd["head_w"], fwd["head_b"])
    out = pl.pallas_call(
        forward_kernel,
        out_shape=jax.ShapeDtypeStruct((voxels.shape[0], OUT_DIM), jnp.float32),
        in_specs=[_vmem_spec() for _ in args],
        out_specs=_vmem_spec(),
    )(*args)
    return out.reshape(voxels.shape[0], N_TOK, TOK_DIM)


# ---------------- params + static (mask / frozen-weight derived) precompute ----------------
def make_setup(key, mask_np):
    # The visual-cortex mask, ROI atlases and the rff Gaussian B matrix are all
    # static registered buffers, so idx / coords / roi_feats / the Fourier slab
    # are constants -> precompute once here (f64 for the trig).
    idx = np.nonzero(mask_np.reshape(-1))[0]
    assert idx.shape[0] == L
    coords64 = np.stack(np.nonzero(mask_np), axis=1).astype(np.float64)        # (L, 3)

    ks = iter(jax.random.split(key, 40))

    def dense(kk, fan_in, fan_out):
        # PyTorch nn.Linear-style init, stored as (in, out) so kernels do x @ W.
        bound = 1.0 / math.sqrt(fan_in)
        kw, kb = jax.random.split(kk)
        w = jax.random.uniform(kw, (fan_in, fan_out), jnp.float32, -bound, bound)
        b = jax.random.uniform(kb, (1, fan_out), jnp.float32, -bound, bound)
        return w, b

    # ROI atlases + embeddings; embedding lookup done ONCE at setup.
    n_regions = [10, 12, 8, 6, 6]
    roi_feats = []
    for n in n_regions:
        vol = np.asarray(jax.random.randint(next(ks), MASK_SHAPE, 0, n, dtype=jnp.int32))
        emb = (jax.random.normal(next(ks), (n, ROI_DIM), jnp.float32)
               * math.sqrt(2.0 / (n + ROI_DIM)))
        roi_feats.append(emb[vol.reshape(-1)[idx]])
    roi_feats = jnp.concatenate(roi_feats, axis=-1)                             # (L, 160) f32

    # rff GaussianEncoding buffer b ~ N(0, sigma^2), shape (ENC, 3); Fourier
    # slab computed host-side in float64 (accuracy + removes EUP cos pass).
    gauss_b = np.asarray(5.0 * jax.random.normal(next(ks), (ENC, 3), jnp.float32),
                         np.float64)
    vp = 2.0 * np.pi * coords64 @ gauss_b.T                                     # (L, ENC)
    enc = np.concatenate([np.cos(vp), np.sin(vp)], axis=-1)                     # (L, 384)
    enc_bf16 = jnp.asarray(enc, jnp.bfloat16)

    # coords_transform
    w1, b1 = dense(next(ks), 2 * ENC, RANK)
    w2, b2 = dense(next(ks), RANK, RANK)
    w3, b3 = dense(next(ks), RANK, RANK)
    # region_feature_project over concat([coords_feat, roi_feat])
    proj_w, proj_b = dense(next(ks), RANK + N_ROIS * ROI_DIM, RANK)
    # attention query embeddings (xavier-ish), used transposed
    query = (jax.random.normal(next(ks), (HIDDEN, RANK), jnp.float32)
             * math.sqrt(2.0 / (HIDDEN + RANK)))
    qT = query.T                                                                # (R, HIDDEN)

    # f32 folds of the nonlinearity-free linear chain (cast once to bf16):
    #   s = gelu2(...) @ (w3 @ proj_wc @ qT) + roi @ (proj_wr @ qT)
    #       + b3 @ proj_wc @ qT + proj_b @ qT
    pc_q = proj_w[:RANK] @ qT                                                   # (R, HIDDEN)
    w_a = w3 @ pc_q                                                             # (R, HIDDEN)
    bias_fold = b3 @ pc_q + proj_b @ qT                                         # (1, HIDDEN)
    static_add = roi_feats @ (proj_w[RANK:] @ qT) + bias_fold                   # (L, HIDDEN)

    # MLP stack + head
    mlp_ws, mlp_bs = zip(*[dense(next(ks), HIDDEN, HIDDEN) for _ in range(N_MLP)])
    head_w, head_b = dense(next(ks), HIDDEN, OUT_DIM)

    # packed per-hidden vectors: [post_g, post_b, mlp_b*4, ln_g*4, ln_b*4]
    vecs32 = jnp.concatenate(
        [jnp.ones((1, HIDDEN), jnp.float32),     # post-LN gain
         jnp.zeros((1, HIDDEN), jnp.float32)]    # post-LN bias
        + list(mlp_bs)
        + [jnp.ones((1, HIDDEN), jnp.float32)] * N_MLP
        + [jnp.zeros((1, HIDDEN), jnp.float32)] * N_MLP,
        axis=0)                                                                 # (14, HIDDEN)

    setup = dict(
        enc=enc_bf16,                                                           # (L, 384) bf16
        w1=w1.astype(jnp.bfloat16),                                             # (384, R)
        w2=w2.astype(jnp.bfloat16),                                             # (R, R)
        w_a=w_a.astype(jnp.bfloat16),                                           # (R, HIDDEN)
        b12=jnp.concatenate([b1, b2], axis=1),                                  # (1, 2R) f32
        static_add=static_add,                                                  # (L, HIDDEN) f32
    )
    fwd = dict(
        vecs32=vecs32,
        mlp_w=jnp.stack(mlp_ws).astype(jnp.bfloat16),                           # (4, H, H)
        head_w=head_w.astype(jnp.bfloat16),                                     # (H, 128)
        head_b=head_b,                                                          # (1, 128) f32
    )
    return setup, fwd, idx


if __name__ == "__main__":
    root = jax.random.PRNGKey(0)
    k_vox, k_par = jax.random.split(root)

    # synthetic "nsdgeneral" visual-cortex mask: exactly half the voxels, deterministic
    mask_np = (np.arange(math.prod(MASK_SHAPE)) % 2 == 0).reshape(MASK_SHAPE)
    setup, fwd, idx = make_setup(k_par, mask_np)

    # masked_select path (voxels.dim() > 2); idx is a static constant so this is
    # a cheap fixed-index gather outside the kernel.
    voxels_vol = jax.random.normal(k_vox, (B,) + MASK_SHAPE, jnp.float32)
    voxels = voxels_vol.reshape(B, -1)[:, idx]                                  # (B, L)

    # setup-time kernel: cache the static attention probabilities
    # (recompute after every weight update when training).
    probs = jax.block_until_ready(compute_attention_probs(setup))               # (L, HIDDEN)

    out = jax.block_until_ready(neuro_forward(voxels, probs, fwd))

    assert out.shape == (B, N_TOK, TOK_DIM), out.shape
    assert bool(jnp.all(jnp.isfinite(out)))
    print("KERNEL_OK")
</pallas_src>

<mosaic_0001>
module attributes {stable_mosaic.version = 11 : i64} {
  func.func @probs_kernel(%arg0: memref<64x384xbf16, #tpu.memory_space<vmem>>, %arg1: memref<384x16xbf16, #tpu.memory_space<vmem>>, %arg2: memref<16x16xbf16, #tpu.memory_space<vmem>>, %arg3: memref<16x32xbf16, #tpu.memory_space<vmem>>, %arg4: memref<1x32xf32, #tpu.memory_space<vmem>>, %arg5: memref<64x32xf32, #tpu.memory_space<vmem>>, %arg6: memref<64x32xf32, #tpu.memory_space<vmem>>) attributes {dimension_semantics = [], scalar_prefetch = 0 : i64, scratch_operands = 0 : i64, tpu.core_type = #tpu.core_type<tc>} {
    %c0 = arith.constant 0 : index
    %c0_0 = arith.constant 0 : index
    %0 = vector.load %arg4[%c0, %c0_0] : memref<1x32xf32, #tpu.memory_space<vmem>>, vector<1x32xf32>
    %c0_1 = arith.constant 0 : index
    %c0_2 = arith.constant 0 : index
    %1 = vector.load %arg0[%c0_1, %c0_2] : memref<64x384xbf16, #tpu.memory_space<vmem>>, vector<64x384xbf16>
    %c0_3 = arith.constant 0 : index
    %c0_4 = arith.constant 0 : index
    %2 = vector.load %arg1[%c0_3, %c0_4] : memref<384x16xbf16, #tpu.memory_space<vmem>>, vector<384x16xbf16>
    %cst = arith.constant dense<0.000000e+00> : vector<64x16xf32>
    %3 = tpu.matmul %1, %2, %cst {dimension_numbers = #tpu.dot_dimension_numbers<[1], [0], [0], [1], [0, 0, 1, 1], [], []>} : vector<64x384xbf16>, vector<384x16xbf16>, vector<64x16xf32> -> vector<64x16xf32>
    %4 = vector.extract_strided_slice %0 {offsets = [0, 0], sizes = [1, 16], strides = [1, 1]} : vector<1x32xf32> to vector<1x16xf32>
    %5 = vector.broadcast %4 : vector<1x16xf32> to vector<64x16xf32>
    %6 = arith.addf %3, %5 : vector<64x16xf32>
    %7 = arith.mulf %6, %6 : vector<64x16xf32>
    %8 = arith.mulf %6, %7 : vector<64x16xf32>
    %cst_5 = arith.constant 4.471500e-02 : f32
    %9 = vector.broadcast %cst_5 : f32 to vector<64x16xf32>
    %10 = arith.mulf %9, %8 : vector<64x16xf32>
    %11 = arith.addf %6, %10 : vector<64x16xf32>
    %cst_6 = arith.constant 0.797884583 : f32
    %12 = vector.broadcast %cst_6 : f32 to vector<64x16xf32>
    %13 = arith.mulf %12, %11 : vector<64x16xf32>
    %14 = math.tanh %13 : vector<64x16xf32>
    %cst_7 = arith.constant 1.000000e+00 : f32
    %15 = vector.broadcast %cst_7 : f32 to vector<64x16xf32>
    %16 = arith.addf %15, %14 : vector<64x16xf32>
    %cst_8 = arith.constant 5.000000e-01 : f32
    %17 = vector.broadcast %cst_8 : f32 to vector<64x16xf32>
    %18 = arith.mulf %17, %16 : vector<64x16xf32>
    %19 = arith.mulf %6, %18 : vector<64x16xf32>
    %20 = arith.truncf %19 : vector<64x16xf32> to vector<64x16xbf16>
    %c0_9 = arith.constant 0 : index
    %c0_10 = arith.constant 0 : index
    %21 = vector.load %arg2[%c0_9, %c0_10] : memref<16x16xbf16, #tpu.memory_space<vmem>>, vector<16x16xbf16>
    %cst_11 = arith.constant dense<0.000000e+00> : vector<64x16xf32>
    %22 = tpu.matmul %20, %21, %cst_11 {dimension_numbers = #tpu.dot_dimension_numbers<[1], [0], [0], [1], [0, 0, 1, 1], [], []>} : vector<64x16xbf16>, vector<16x16xbf16>, vector<64x16xf32> -> vector<64x16xf32>
    %23 = vector.extract_strided_slice %0 {offsets = [0, 16], sizes = [1, 16], strides = [1, 1]} : vector<1x32xf32> to vector<1x16xf32>
    %24 = vector.broadcast %23 : vector<1x16xf32> to vector<64x16xf32>
    %25 = arith.addf %22, %24 : vector<64x16xf32>
    %26 = arith.mulf %25, %25 : vector<64x16xf32>
    %27 = arith.mulf %25, %26 : vector<64x16xf32>
    %cst_12 = arith.constant 4.471500e-02 : f32
    %28 = vector.broadcast %cst_12 : f32 to vector<64x16xf32>
    %29 = arith.mulf %28, %27 : vector<64x16xf32>
    %30 = arith.addf %25, %29 : vector<64x16xf32>
    %cst_13 = arith.constant 0.797884583 : f32
    %31 = vector.broadcast %cst_13 : f32 to vector<64x16xf32>
    %32 = arith.mulf %31, %30 : vector<64x16xf32>
    %33 = math.tanh %32 : vector<64x16xf32>
    %cst_14 = arith.constant 1.000000e+00 : f32
    %34 = vector.broadcast %cst_14 : f32 to vector<64x16xf32>
    %35 = arith.addf %34, %33 : vector<64x16xf32>
    %cst_15 = arith.constant 5.000000e-01 : f32
    %36 = vector.broadcast %cst_15 : f32 to vector<64x16xf32>
    %37 = arith.mulf %36, %35 : vector<64x16xf32>
    %38 = arith.mulf %25, %37 : vector<64x16xf32>
    %39 = arith.truncf %38 : vector<64x16xf32> to vector<64x16xbf16>
    %c0_16 = arith.constant 0 : index
    %c0_17 = arith.constant 0 : index
    %40 = vector.load %arg3[%c0_16, %c0_17] : memref<16x32xbf16, #tpu.memory_space<vmem>>, vector<16x32xbf16>
    %cst_18 = arith.constant dense<0.000000e+00> : vector<64x32xf32>
    %41 = tpu.matmul %39, %40, %cst_18 {dimension_numbers = #tpu.dot_dimension_numbers<[1], [0], [0], [1], [0, 0, 1, 1], [], []>} : vector<64x16xbf16>, vector<16x32xbf16>, vector<64x32xf32> -> vector<64x32xf32>
    %c0_19 = arith.constant 0 : index
    %c0_20 = arith.constant 0 : index
    %42 = vector.load %arg5[%c0_19, %c0_20] : memref<64x32xf32, #tpu.memory_space<vmem>>, vector<64x32xf32>
    %43 = arith.addf %41, %42 : vector<64x32xf32>
    %cst_21 = arith.constant dense<0xFF800000> : vector<32xf32>
    %44 = vector.multi_reduction <maximumf>, %43, %cst_21 [0] : vector<64x32xf32> to vector<32xf32>
    %45 = vector.shape_cast %44 : vector<32xf32> to vector<1x32xf32>
    %46 = vector.broadcast %45 : vector<1x32xf32> to vector<64x32xf32>
    %47 = arith.subf %43, %46 : vector<64x32xf32>
    %48 = math.exp %47 : vector<64x32xf32>
    %cst_22 = arith.constant dense<0.000000e+00> : vector<32xf32>
    %49 = vector.multi_reduction <add>, %48, %cst_22 [0] : vector<64x32xf32> to vector<32xf32>
    %50 = vector.shape_cast %49 : vector<32xf32> to vector<1x32xf32>
    %51 = tpu.reciprocal %50 {approx = true} : vector<1x32xf32> -> vector<1x32xf32>
    %52 = vector.broadcast %51 : vector<1x32xf32> to vector<64x32xf32>
    %53 = arith.mulf %48, %52 : vector<64x32xf32>
    %c0_23 = arith.constant 0 : index
    %c0_24 = arith.constant 0 : index
    %54 = vector.load %arg6[%c0_23, %c0_24] : memref<64x32xf32, #tpu.memory_space<vmem>>, vector<64x32xf32>
    tpu.vector_store %arg6[%c0_23, %c0_24], %53 {strides = array<i32>} : memref<64x32xf32, #tpu.memory_space<vmem>>, vector<64x32xf32>,
    return
  }
}

</mosaic_0001>

<llo_original>
// kernel: tpu_custom_call.1
$region0: #{tpu_custom_call.1}
  #allocation0 [shape = 'u32[]', space=smem, size = 0x4, offset = 0x4, fixed_abs, tag = 'smem constant byte address 0x4 - core index']
  #allocation1 [shape = 'u32[144,128]{1,0:T(1,128)}', space=vmem, size = 0x12000, scoped, tag = 'internal scratch']
  %s0 = inlined_call_operand.vmem [shape: bf16[64,384], index: 0, kind: input, shape index: {}]
  %s1 = inlined_call_operand.vmem [shape: bf16[384,16], index: 1, kind: input, shape index: {}]
  %s2 = inlined_call_operand.vmem [shape: bf16[16,16], index: 2, kind: input, shape index: {}]
  %s3 = inlined_call_operand.vmem [shape: bf16[16,32], index: 3, kind: input, shape index: {}]
  %s4 = inlined_call_operand.vmem [shape: f32[1,32], index: 4, kind: input, shape index: {}]
  %s5 = inlined_call_operand.vmem [shape: f32[64,32], index: 5, kind: input, shape index: {}]
  %s6 = inlined_call_operand.vmem [shape: f32[64,32], index: 6, kind: output, shape index: {}]
  %s7 = sld [smem:[#allocation0]]
  $region34: #{tpu_custom_call.1} parent=0
    _
  %s9 = ssub.s32 1, %s7
  %s10 = scalar_select 0, %s9, %s7
  // Predicated region
  $region2: #{tpu_custom_call.1} parent=0 // pred_check
    _
  $region3: #{tpu_custom_call.1} parent=0 // pred_check_branch
    %12 = sbr.rel (0) target = $region5
  $region4: #{tpu_custom_call.1} parent=0 // pred_region
    _
  $region5: #{tpu_custom_call.1} parent=0 // pred_fallthru
    _
  // Predicated region
  $region6: #{tpu_custom_call.1} parent=0 // pred_check
    _
  $region7: #{tpu_custom_call.1} parent=0 // pred_check_branch
    %14 = sbr.rel (0) target = $region9
  $region8: #{tpu_custom_call.1} parent=0 // pred_region
    _
  $region9: #{tpu_custom_call.1} parent=0 // pred_fallthru
    _
  // Predicated region
  $region10: #{tpu_custom_call.1} parent=0 // pred_check
    _
  $region11: #{tpu_custom_call.1} parent=0 // pred_check_branch
    %16 = sbr.rel (0) target = $region13
  $region12: #{tpu_custom_call.1} parent=0 // pred_region
    _
  $region13: #{tpu_custom_call.1} parent=0 // pred_fallthru
    _
  // Predicated region
  $region14: #{tpu_custom_call.1} parent=0 // pred_check
    _
  $region15: #{tpu_custom_call.1} parent=0 // pred_check_branch
    %18 = sbr.rel (0) target = $region17
  $region16: #{tpu_custom_call.1} parent=0 // pred_region
    _
  $region17: #{tpu_custom_call.1} parent=0 // pred_fallthru
    _
  // Predicated region
  $region18: #{tpu_custom_call.1} parent=0 // pred_check
    _
  $region19: #{tpu_custom_call.1} parent=0 // pred_check_branch
    %20 = sbr.rel (0) target = $region21
  $region20: #{tpu_custom_call.1} parent=0 // pred_region
    _
  $region21: #{tpu_custom_call.1} parent=0 // pred_fallthru
    _
  // Predicated region
  $region22: #{tpu_custom_call.1} parent=0 // pred_check
    _
  $region23: #{tpu_custom_call.1} parent=0 // pred_check_branch
    %22 = sbr.rel (0) target = $region25
  $region24: #{tpu_custom_call.1} parent=0 // pred_region
    _
  $region25: #{tpu_custom_call.1} parent=0 // pred_fallthru
    _
  %v24 = vld [vmem:[%s4] sm:$0x1]
  %v25 = vld [vmem:[%s0] sm:$0xff]
  %v26 = vld [vmem:[%s0 + $0x8] sm:$0xf]
  %v27 = vld [vmem:[%s0 + $0xc] sm:$0xff]
  %v28 = vld [vmem:[%s0 + $0x14] sm:$0xf]
  %v29 = vld [vmem:[%s0 + $0x18] sm:$0xff]
  %v30 = vld [vmem:[%s0 + $0x20] sm:$0xf]
  %v31 = vld [vmem:[%s0 + $0x24] sm:$0xff]
  %v32 = vld [vmem:[%s0 + $0x2c] sm:$0xf]
  %v33 = vld [vmem:[%s0 + $0x30] sm:$0xff]
  %v34 = vld [vmem:[%s0 + $0x38] sm:$0xf]
  %v35 = vld [vmem:[%s0 + $0x3c] sm:$0xff]
  %v36 = vld [vmem:[%s0 + $0x44] sm:$0xf]
  %v37 = vld [vmem:[%s0 + $0x48] sm:$0xff]
  %v38 = vld [vmem:[%s0 + $0x50] sm:$0xf]
  %v39 = vld [vmem:[%s0 + $0x54] sm:$0xff]
  %v40 = vld [vmem:[%s0 + $0x5c] sm:$0xf]
  %v41 = vld [vmem:[%s1] sm:$0xf]
  %v42 = vld [vmem:[%s1 + $0x4] sm:$0xf]
  %v43 = vld [vmem:[%s1 + $0x8] sm:$0xf]
  %v44 = vld [vmem:[%s1 + $0xc] sm:$0xf]
  %v45 = vld [vmem:[%s1 + $0x10] sm:$0xf]
  %v46 = vld [vmem:[%s1 + $0x14] sm:$0xf]
  %v47 = vld [vmem:[%s1 + $0x18] sm:$0xf]
  %v48 = vld [vmem:[%s1 + $0x1c] sm:$0xf]
  %v49 = vld [vmem:[%s1 + $0x20] sm:$0xf]
  %v50 = vld [vmem:[%s1 + $0x24] sm:$0xf]
  %v51 = vld [vmem:[%s1 + $0x28] sm:$0xf]
  %v52 = vld [vmem:[%s1 + $0x2c] sm:$0xf]
  %v53 = vld [vmem:[%s1 + $0x30] sm:$0xf]
  %v54 = vld [vmem:[%s1 + $0x34] sm:$0xf]
  %v55 = vld [vmem:[%s1 + $0x38] sm:$0xf]
  %v56 = vld [vmem:[%s1 + $0x3c] sm:$0xf]
  %v57 = vld [vmem:[%s1 + $0x40] sm:$0xf]
  %v58 = vld [vmem:[%s1 + $0x44] sm:$0xf]
  %v59 = vld [vmem:[%s1 + $0x48] sm:$0xf]
  %v60 = vld [vmem:[%s1 + $0x4c] sm:$0xf]
  %v61 = vld [vmem:[%s1 + $0x50] sm:$0xf]
  %v62 = vld [vmem:[%s1 + $0x54] sm:$0xf]
  %v63 = vld [vmem:[%s1 + $0x58] sm:$0xf]
  %v64 = vld [vmem:[%s1 + $0x5c] sm:$0xf]
  %v65 = vld [vmem:[%s1 + $0x60] sm:$0xf]
  %v66 = vld [vmem:[%s1 + $0x64] sm:$0xf]
  %v67 = vld [vmem:[%s1 + $0x68] sm:$0xf]
  %v68 = vld [vmem:[%s1 + $0x6c] sm:$0xf]
  %v69 = vld [vmem:[%s1 + $0x70] sm:$0xf]
  %v70 = vld [vmem:[%s1 + $0x74] sm:$0xf]
  %v71 = vld [vmem:[%s1 + $0x78] sm:$0xf]
  %v72 = vld [vmem:[%s1 + $0x7c] sm:$0xf]
  %v73 = vld [vmem:[%s1 + $0x80] sm:$0xf]
  %v74 = vld [vmem:[%s1 + $0x84] sm:$0xf]
  %v75 = vld [vmem:[%s1 + $0x88] sm:$0xf]
  %v76 = vld [vmem:[%s1 + $0x8c] sm:$0xf]
  %v77 = vld [vmem:[%s1 + $0x90] sm:$0xf]
  %v78 = vld [vmem:[%s1 + $0x94] sm:$0xf]
  %v79 = vld [vmem:[%s1 + $0x98] sm:$0xf]
  %v80 = vld [vmem:[%s1 + $0x9c] sm:$0xf]
  %v81 = vld [vmem:[%s1 + $0xa0] sm:$0xf]
  %v82 = vld [vmem:[%s1 + $0xa4] sm:$0xf]
  %v83 = vld [vmem:[%s1 + $0xa8] sm:$0xf]
  %v84 = vld [vmem:[%s1 + $0xac] sm:$0xf]
  %v85 = vld [vmem:[%s1 + $0xb0] sm:$0xf]
  %v86 = vld [vmem:[%s1 + $0xb4] sm:$0xf]
  %v87 = vld [vmem:[%s1 + $0xb8] sm:$0xf]
  %v88 = vld [vmem:[%s1 + $0xbc] sm:$0xf]
  %v90 = vlaneseq
  %v91 = vshrl.u32 %v90, 7
  %v92 = vsub.s32 0, %v91
  %v93 = vrot.slane %v24, %v92
  %v111 = vunpack.c.l.b16 %v25
  %v112 = vunpack.c.h.b16 %v25
  %v113 = vunpack.c.l.b16 %v26
  %v114 = vunpack.c.l.b16 %v27
  %v115 = vunpack.c.h.b16 %v27
  %v116 = vunpack.c.l.b16 %v28
  %v117 = vunpack.c.l.b16 %v29
  %v118 = vunpack.c.h.b16 %v29
  %v119 = vunpack.c.l.b16 %v30
  %v120 = vunpack.c.l.b16 %v31
  %v121 = vunpack.c.h.b16 %v31
  %v122 = vunpack.c.l.b16 %v32
  %v123 = vunpack.c.l.b16 %v33
  %v124 = vunpack.c.h.b16 %v33
  %v125 = vunpack.c.l.b16 %v34
  %v126 = vunpack.c.l.b16 %v35
  %v127 = vunpack.c.h.b16 %v35
  %v128 = vunpack.c.l.b16 %v36
  %v129 = vunpack.c.l.b16 %v37
  %v130 = vunpack.c.h.b16 %v37
  %v131 = vunpack.c.l.b16 %v38
  %v132 = vunpack.c.l.b16 %v39
  %v133 = vunpack.c.h.b16 %v39
  %v134 = vunpack.c.l.b16 %v40
  %v135 = vpack.c.b16 %v114, %v111
  %v136 = vpack.c.b16 %v115, %v112
  %v137 = vpack.c.b16 %v116, %v113
  %v138 = vpack.c.b16 %v120, %v117
  %v139 = vpack.c.b16 %v121, %v118
  %v140 = vpack.c.b16 %v122, %v119
  %v141 = vpack.c.b16 %v126, %v123
  %v142 = vpack.c.b16 %v127, %v124
  %v143 = vpack.c.b16 %v128, %v125
  %v144 = vpack.c.b16 %v132, %v129
  %v145 = vpack.c.b16 %v133, %v130
  %v146 = vpack.c.b16 %v134, %v131
  %v207 = vunpack.c.l.b16 %v41
  %v208 = vunpack.c.l.b16 %v42
  %v209 = vunpack.c.l.b16 %v43
  %v210 = vunpack.c.l.b16 %v44
  %v211 = vunpack.c.l.b16 %v45
  %v212 = vunpack.c.l.b16 %v46
  %v213 = vunpack.c.l.b16 %v47
  %v214 = vunpack.c.l.b16 %v48
  %v215 = vunpack.c.l.b16 %v49
  %v216 = vunpack.c.l.b16 %v50
  %v217 = vunpack.c.l.b16 %v51
  %v218 = vunpack.c.l.b16 %v52
  %v219 = vunpack.c.l.b16 %v53
  %v220 = vunpack.c.l.b16 %v54
  %v221 = vunpack.c.l.b16 %v55
  %v222 = vunpack.c.l.b16 %v56
  %v223 = vunpack.c.l.b16 %v57
  %v224 = vunpack.c.l.b16 %v58
  %v225 = vunpack.c.l.b16 %v59
  %v226 = vunpack.c.l.b16 %v60
  %v227 = vunpack.c.l.b16 %v61
  %v228 = vunpack.c.l.b16 %v62
  %v229 = vunpack.c.l.b16 %v63
  %v230 = vunpack.c.l.b16 %v64
  %v231 = vunpack.c.l.b16 %v65
  %v232 = vunpack.c.l.b16 %v66
  %v233 = vunpack.c.l.b16 %v67
  %v234 = vunpack.c.l.b16 %v68
  %v235 = vunpack.c.l.b16 %v69
  %v236 = vunpack.c.l.b16 %v70
  %v237 = vunpack.c.l.b16 %v71
  %v238 = vunpack.c.l.b16 %v72
  %v239 = vunpack.c.l.b16 %v73
  %v240 = vunpack.c.l.b16 %v74
  %v241 = vunpack.c.l.b16 %v75
  %v242 = vunpack.c.l.b16 %v76
  %v243 = vunpack.c.l.b16 %v77
  %v244 = vunpack.c.l.b16 %v78
  %v245 = vunpack.c.l.b16 %v79
  %v246 = vunpack.c.l.b16 %v80
  %v247 = vunpack.c.l.b16 %v81
  %v248 = vunpack.c.l.b16 %v82
  %v249 = vunpack.c.l.b16 %v83
  %v250 = vunpack.c.l.b16 %v84
  %v251 = vunpack.c.l.b16 %v85
  %v252 = vunpack.c.l.b16 %v86
  %v253 = vunpack.c.l.b16 %v87
  %v254 = vunpack.c.l.b16 %v88
  %v255 = vpack.c.b16 %v208, %v207
  %v256 = vpack.c.b16 %v210, %v209
  %v257 = vpack.c.b16 %v212, %v211
  %v258 = vpack.c.b16 %v214, %v213
  %v259 = vpack.c.b16 %v216, %v215
  %v260 = vpack.c.b16 %v218, %v217
  %v261 = vpack.c.b16 %v220, %v219
  %v262 = vpack.c.b16 %v222, %v221
  %v263 = vpack.c.b16 %v224, %v223
  %v264 = vpack.c.b16 %v226, %v225
  %v265 = vpack.c.b16 %v228, %v227
  %v266 = vpack.c.b16 %v230, %v229
  %v267 = vpack.c.b16 %v232, %v231
  %v268 = vpack.c.b16 %v234, %v233
  %v269 = vpack.c.b16 %v236, %v235
  %v270 = vpack.c.b16 %v238, %v237
  %v271 = vpack.c.b16 %v240, %v239
  %v272 = vpack.c.b16 %v242, %v241
  %v273 = vpack.c.b16 %v244, %v243
  %v274 = vpack.c.b16 %v246, %v245
  %v275 = vpack.c.b16 %v248, %v247
  %v276 = vpack.c.b16 %v250, %v249
  %v277 = vpack.c.b16 %v252, %v251
  %v278 = vpack.c.b16 %v254, %v253
  %303 = vmatprep.subr.bf16.mxu0 0
  %304 = vmatpush1.bf16.msra.mxu0 %v262
  %305 = vmatprep.subr.bf16.mxu0 0
  %306 = vmatpush1.bf16.msra.mxu0 %v261
  %307 = vmatprep.subr.bf16.mxu0 0
  %308 = vmatpush1.bf16.msra.mxu0 %v260
  %309 = vmatprep.subr.bf16.mxu0 0
  %310 = vmatpush1.bf16.msra.mxu0 %v259
  %311 = vmatprep.subr.bf16.mxu0 0
  %312 = vmatpush1.bf16.msra.mxu0 %v258
  %313 = vmatprep.subr.bf16.mxu0 0
  %314 = vmatpush1.bf16.msra.mxu0 %v257
  %315 = vmatprep.subr.bf16.mxu0 0
  %316 = vmatpush1.bf16.msra.mxu0 %v256
  %317 = vmatprep.subr.bf16.mxu0 0
  %318 = vmatpush1.bf16.msra.mxu0 %v255
  %319 = vmatprep.subr.bf16.mxu0 0
  %320 = vmatpush2.bf16.msra.mxu0 %v270
  %321 = vmatprep.subr.bf16.mxu0 0
  %322 = vmatpush2.bf16.msra.mxu0 %v269
  %323 = vmatprep.subr.bf16.mxu0 0
  %324 = vmatpush2.bf16.msra.mxu0 %v268
  %325 = vmatprep.subr.bf16.mxu0 0
  %326 = vmatpush2.bf16.msra.mxu0 %v267
  %327 = vmatprep.subr.bf16.mxu0 0
  %328 = vmatpush2.bf16.msra.mxu0 %v266
  %329 = vmatprep.subr.bf16.mxu0 0
  %330 = vmatpush2.bf16.msra.mxu0 %v265
  %331 = vmatprep.subr.bf16.mxu0 0
  %332 = vmatpush2.bf16.msra.mxu0 %v264
  %333 = vmatprep.subr.bf16.mxu0 0
  %334 = vmatpush2.bf16.msra.mxu0 %v263
  %335 = vmatprep.mubr.bf16.mxu0 %v136
  %336 = vmatmul.mubr.bf16.gmra.mxu0 %v135
  %v337 = vpop.f32.mrf.mxu0
  %v338 = vadd.f32 %v93, %v337
  %v339 = vpop.f32.mrf.mxu0
  %v340 = vpop.f32.mrf.mxu0
  %v341 = vadd.f32 %v93, %v340
  %v342 = vpop.f32.mrf.mxu0
  %343 = vmatprep.mubr.bf16.mxu0 %v139
  %344 = vmatmul.mubr.bf16.gmra.mxu0 %v138
  %v345 = vpop.f32.mrf.mxu0
  %v346 = vadd.f32 %v93, %v345
  %v347 = vpop.f32.mrf.mxu0
  %v348 = vpop.f32.mrf.mxu0
  %v349 = vadd.f32 %v93, %v348
  %v350 = vpop.f32.mrf.mxu0
  %351 = vmatprep.mubr.bf16.mxu0 %v142
  %352 = vmatmul.mubr.bf16.gmra.mxu0 %v141
  %v353 = vpop.f32.mrf.mxu0
  %v354 = vadd.f32 %v93, %v353
  %v355 = vpop.f32.mrf.mxu0
  %v356 = vpop.f32.mrf.mxu0
  %v357 = vadd.f32 %v93, %v356
  %v358 = vpop.f32.mrf.mxu0
  %359 = vmatprep.mubr.bf16.mxu0 %v145
  %360 = vmatmul.mubr.bf16.gmra.mxu0 %v144
  %v361 = vpop.f32.mrf.mxu0
  %v362 = vadd.f32 %v93, %v361
  %v363 = vpop.f32.mrf.mxu0
  %v364 = vpop.f32.mrf.mxu0
  %v365 = vadd.f32 %v93, %v364
  %v366 = vpop.f32.mrf.mxu0
  %367 = vdwg.mxu0
  %368 = vmatprep.subr.bf16.mxu0 0
  %369 = vmatpush1.bf16.msra.mxu0 %v278
  %370 = vmatprep.subr.bf16.mxu0 0
  %371 = vmatpush1.bf16.msra.mxu0 %v277
  %372 = vmatprep.subr.bf16.mxu0 0
  %373 = vmatpush1.bf16.msra.mxu0 %v276
  %374 = vmatprep.subr.bf16.mxu0 0
  %375 = vmatpush1.bf16.msra.mxu0 %v275
  %376 = vmatprep.subr.bf16.mxu0 0
  %377 = vmatpush1.bf16.msra.mxu0 %v274
  %378 = vmatprep.subr.bf16.mxu0 0
  %379 = vmatpush1.bf16.msra.mxu0 %v273
  %380 = vmatprep.subr.bf16.mxu0 0
  %381 = vmatpush1.bf16.msra.mxu0 %v272
  %382 = vmatprep.subr.bf16.mxu0 0
  %383 = vmatpush1.bf16.msra.mxu0 %v271
  %384 = vmatprep.subr.bf16.mxu0 0
  %385 = vmatpush2.bf16.msra.mxu0 0
  %386 = vmatprep.subr.bf16.mxu0 0
  %387 = vmatpush2.bf16.msra.mxu0 0
  %388 = vmatprep.subr.bf16.mxu0 0
  %389 = vmatpush2.bf16.msra.mxu0 0
  %390 = vmatprep.subr.bf16.mxu0 0
  %391 = vmatpush2.bf16.msra.mxu0 0
  %392 = vmatprep.subr.bf16.mxu0 0
  %393 = vmatpush2.bf16.msra.mxu0 0
  %394 = vmatprep.subr.bf16.mxu0 0
  %395 = vmatpush2.bf16.msra.mxu0 0
  %396 = vmatprep.subr.bf16.mxu0 0
  %397 = vmatpush2.bf16.msra.mxu0 0
  %398 = vmatprep.subr.bf16.mxu0 0
  %399 = vmatpush2.bf16.msra.mxu0 0
  %400 = vmatprep.mubr.bf16.mxu0 0
  %401 = vmatmul.mubr.bf16.gmra.mxu0 %v137
  %v402 = vpop.f32.mrf.mxu0
  %v403 = vadd.f32 %v338, %v402
  %v404 = vpop.f32.mrf.mxu0
  %v405 = vpop.f32.mrf.mxu0
  %v406 = vadd.f32 %v341, %v405
  %v407 = vpop.f32.mrf.mxu0
  %408 = vmatprep.mubr.bf16.mxu0 0
  %409 = vmatmul.mubr.bf16.gmra.mxu0 %v140
  %v410 = vpop.f32.mrf.mxu0
  %v411 = vadd.f32 %v346, %v410
  %v412 = vpop.f32.mrf.mxu0
  %v413 = vpop.f32.mrf.mxu0
  %v414 = vadd.f32 %v349, %v413
  %v415 = vpop.f32.mrf.mxu0
  %416 = vmatprep.mubr.bf16.mxu0 0
  %417 = vmatmul.mubr.bf16.gmra.mxu0 %v143
  %v418 = vpop.f32.mrf.mxu0
  %v419 = vadd.f32 %v354, %v418
  %v420 = vpop.f32.mrf.mxu0
  %v421 = vpop.f32.mrf.mxu0
  %v422 = vadd.f32 %v357, %v421
  %v423 = vpop.f32.mrf.mxu0
  %424 = vmatprep.mubr.bf16.mxu0 0
  %425 = vmatmul.mubr.bf16.gmra.mxu0 %v146
  %v426 = vpop.f32.mrf.mxu0
  %v427 = vadd.f32 %v362, %v426
  %v428 = vpop.f32.mrf.mxu0
  %v429 = vpop.f32.mrf.mxu0
  %v430 = vadd.f32 %v365, %v429
  %v431 = vpop.f32.mrf.mxu0
  %432 = vdwg.mxu0
  %v433 = vmul.f32 %v403, %v403
  %v434 = vmul.f32 %v406, %v406
  %v435 = vmul.f32 %v411, %v411
  %v436 = vmul.f32 %v414, %v414
  %v437 = vmul.f32 %v419, %v419
  %v438 = vmul.f32 %v422, %v422
  %v439 = vmul.f32 %v427, %v427
  %v440 = vmul.f32 %v430, %v430
  %v441 = vmul.f32 %v403, %v433
  %v442 = vmul.f32 %v406, %v434
  %v443 = vmul.f32 %v411, %v435
  %v444 = vmul.f32 %v414, %v436
  %v445 = vmul.f32 %v419, %v437
  %v446 = vmul.f32 %v422, %v438
  %v447 = vmul.f32 %v427, %v439
  %v448 = vmul.f32 %v430, %v440
  %v449 = vmul.f32 %v441, 0.044715
  %v450 = vmul.f32 %v442, 0.044715
  %v451 = vmul.f32 %v443, 0.044715
  %v452 = vmul.f32 %v444, 0.044715
  %v453 = vmul.f32 %v445, 0.044715
  %v454 = vmul.f32 %v446, 0.044715
  %v455 = vmul.f32 %v447, 0.044715
  %v456 = vmul.f32 %v448, 0.044715
  %v457 = vadd.f32 %v403, %v449
  %v458 = vadd.f32 %v406, %v450
  %v459 = vadd.f32 %v411, %v451
  %v460 = vadd.f32 %v414, %v452
  %v461 = vadd.f32 %v419, %v453
  %v462 = vadd.f32 %v422, %v454
  %v463 = vadd.f32 %v427, %v455
  %v464 = vadd.f32 %v430, %v456
  %v465 = vmul.f32 %v457, 0.7978846
  %v466 = vmul.f32 %v458, 0.7978846
  %v467 = vmul.f32 %v459, 0.7978846
  %v468 = vmul.f32 %v460, 0.7978846
  %v469 = vmul.f32 %v461, 0.7978846
  %v470 = vmul.f32 %v462, 0.7978846
  %v471 = vmul.f32 %v463, 0.7978846
  %v472 = vmul.f32 %v464, 0.7978846
  %v473 = vtanh.pop %v465
  %v474 = vtanh.pop %v466
  %v475 = vtanh.pop %v467
  %v476 = vtanh.pop %v468
  %v477 = vtanh.pop %v469
  %v478 = vtanh.pop %v470
  %v479 = vtanh.pop %v471
  %v480 = vtanh.pop %v472
  %v481 = vadd.f32 %v473, 1.0
  %v482 = vadd.f32 %v474, 1.0
  %v483 = vadd.f32 %v475, 1.0
  %v484 = vadd.f32 %v476, 1.0
  %v485 = vadd.f32 %v477, 1.0
  %v486 = vadd.f32 %v478, 1.0
  %v487 = vadd.f32 %v479, 1.0
  %v488 = vadd.f32 %v480, 1.0
  %v489 = vmul.f32 %v481, 0.5
  %v490 = vmul.f32 %v482, 0.5
  %v491 = vmul.f32 %v483, 0.5
  %v492 = vmul.f32 %v484, 0.5
  %v493 = vmul.f32 %v485, 0.5
  %v494 = vmul.f32 %v486, 0.5
  %v495 = vmul.f32 %v487, 0.5
  %v496 = vmul.f32 %v488, 0.5
  %v497 = vmul.f32 %v403, %v489
  %v498 = vmul.f32 %v406, %v490
  %v499 = vmul.f32 %v411, %v491
  %v500 = vmul.f32 %v414, %v492
  %v501 = vmul.f32 %v419, %v493
  %v502 = vmul.f32 %v422, %v494
  %v503 = vmul.f32 %v427, %v495
  %v504 = vmul.f32 %v430, %v496
  %v505 = vpack.c.bf16 %v498, %v497
  %v506 = vpack.c.bf16 %v500, %v499
  %v507 = vpack.c.bf16 %v502, %v501
  %v508 = vpack.c.bf16 %v504, %v503
  %v509 = vld [vmem:[%s2] sm:$0xf]
  %v510 = vld [vmem:[%s2 + $0x4] sm:$0xf]
  %v513 = vunpack.c.l.b16 %v509
  %v514 = vunpack.c.l.b16 %v510
  %v515 = vpack.c.b16 %v514, %v513
  %517 = vrot.lane.b32.xlu0 %v93, 112
  %v518 = vpop.permute.xlu0 %517
  %vm520 = vcmask 130048
  %v522 = vsel %vm520, %v505, 0
  %v525 = vsel %vm520, %v506, 0
  %v528 = vsel %vm520, %v507, 0
  %v531 = vsel %vm520, %v508, 0
  %533 = vmatprep.subr.bf16.mxu0 0
  %534 = vmatpush1.bf16.msra.mxu0 0
  %535 = vmatprep.subr.bf16.mxu0 0
  %536 = vmatpush1.bf16.msra.mxu0 0
  %537 = vmatprep.subr.bf16.mxu0 0
  %538 = vmatpush1.bf16.msra.mxu0 0
  %539 = vmatprep.subr.bf16.mxu0 0
  %540 = vmatpush1.bf16.msra.mxu0 0
  %541 = vmatprep.subr.bf16.mxu0 0
  %542 = vmatpush1.bf16.msra.mxu0 0
  %543 = vmatprep.subr.bf16.mxu0 0
  %544 = vmatpush1.bf16.msra.mxu0 0
  %545 = vmatprep.subr.bf16.mxu0 0
  %546 = vmatpush1.bf16.msra.mxu0 0
  %547 = vmatprep.subr.bf16.mxu0 0
  %548 = vmatpush1.bf16.msra.mxu0 %v515
  %549 = vmatprep.subr.bf16.mxu0 0
  %550 = vmatpush2.bf16.msra.mxu0 0
  %551 = vmatprep.subr.bf16.mxu0 0
  %552 = vmatpush2.bf16.msra.mxu0 0
  %553 = vmatprep.subr.bf16.mxu0 0
  %554 = vmatpush2.bf16.msra.mxu0 0
  %555 = vmatprep.subr.bf16.mxu0 0
  %556 = vmatpush2.bf16.msra.mxu0 0
  %557 = vmatprep.subr.bf16.mxu0 0
  %558 = vmatpush2.bf16.msra.mxu0 0
  %559 = vmatprep.subr.bf16.mxu0 0
  %560 = vmatpush2.bf16.msra.mxu0 0
  %561 = vmatprep.subr.bf16.mxu0 0
  %562 = vmatpush2.bf16.msra.mxu0 0
  %563 = vmatprep.subr.bf16.mxu0 0
  %564 = vmatpush2.bf16.msra.mxu0 0
  %565 = vmatprep.mubr.bf16.mxu0 0
  %566 = vmatmul.mubr.bf16.gmra.mxu0 %v522
  %v567 = vpop.f32.mrf.mxu0
  %v568 = vadd.f32 %v518, %v567
  %v569 = vpop.f32.mrf.mxu0
  %v570 = vpop.f32.mrf.mxu0
  %v571 = vadd.f32 %v518, %v570
  %v572 = vpop.f32.mrf.mxu0
  %573 = vmatprep.mubr.bf16.mxu0 0
  %574 = vmatmul.mubr.bf16.gmra.mxu0 %v525
  %v575 = vpop.f32.mrf.mxu0
  %v576 = vadd.f32 %v518, %v575
  %v577 = vpop.f32.mrf.mxu0
  %v578 = vpop.f32.mrf.mxu0
  %v579 = vadd.f32 %v518, %v578
  %v580 = vpop.f32.mrf.mxu0
  %581 = vmatprep.mubr.bf16.mxu0 0
  %582 = vmatmul.mubr.bf16.gmra.mxu0 %v528
  %v583 = vpop.f32.mrf.mxu0
  %v584 = vadd.f32 %v518, %v583
  %v585 = vpop.f32.mrf.mxu0
  %v586 = vpop.f32.mrf.mxu0
  %v587 = vadd.f32 %v518, %v586
  %v588 = vpop.f32.mrf.mxu0
  %589 = vmatprep.mubr.bf16.mxu0 0
  %590 = vmatmul.mubr.bf16.gmra.mxu0 %v531
  %v591 = vpop.f32.mrf.mxu0
  %v592 = vadd.f32 %v518, %v591
  %v593 = vpop.f32.mrf.mxu0
  %v594 = vpop.f32.mrf.mxu0
  %v595 = vadd.f32 %v518, %v594
  %v596 = vpop.f32.mrf.mxu0
  %597 = vdwg.mxu0
  %v598 = vmul.f32 %v568, %v568
  %v599 = vmul.f32 %v571, %v571
  %v600 = vmul.f32 %v576, %v576
  %v601 = vmul.f32 %v579, %v579
  %v602 = vmul.f32 %v584, %v584
  %v603 = vmul.f32 %v587, %v587
  %v604 = vmul.f32 %v592, %v592
  %v605 = vmul.f32 %v595, %v595
  %v606 = vmul.f32 %v568, %v598
  %v607 = vmul.f32 %v571, %v599
  %v608 = vmul.f32 %v576, %v600
  %v609 = vmul.f32 %v579, %v601
  %v610 = vmul.f32 %v584, %v602
  %v611 = vmul.f32 %v587, %v603
  %v612 = vmul.f32 %v592, %v604
  %v613 = vmul.f32 %v595, %v605
  %v614 = vmul.f32 %v606, 0.044715
  %v615 = vmul.f32 %v607, 0.044715
  %v616 = vmul.f32 %v608, 0.044715
  %v617 = vmul.f32 %v609, 0.044715
  %v618 = vmul.f32 %v610, 0.044715
  %v619 = vmul.f32 %v611, 0.044715
  %v620 = vmul.f32 %v612, 0.044715
  %v621 = vmul.f32 %v613, 0.044715
  %v622 = vadd.f32 %v568, %v614
  %v623 = vadd.f32 %v571, %v615
  %v624 = vadd.f32 %v576, %v616
  %v625 = vadd.f32 %v579, %v617
  %v626 = vadd.f32 %v584, %v618
  %v627 = vadd.f32 %v587, %v619
  %v628 = vadd.f32 %v592, %v620
  %v629 = vadd.f32 %v595, %v621
  %v630 = vmul.f32 %v622, 0.7978846
  %v631 = vmul.f32 %v623, 0.7978846
  %v632 = vmul.f32 %v624, 0.7978846
  %v633 = vmul.f32 %v625, 0.7978846
  %v634 = vmul.f32 %v626, 0.7978846
  %v635 = vmul.f32 %v627, 0.7978846
  %v636 = vmul.f32 %v628, 0.7978846
  %v637 = vmul.f32 %v629, 0.7978846
  %v638 = vtanh.pop %v630
  %v639 = vtanh.pop %v631
  %v640 = vtanh.pop %v632
  %v641 = vtanh.pop %v633
  %v642 = vtanh.pop %v634
  %v643 = vtanh.pop %v635
  %v644 = vtanh.pop %v636
  %v645 = vtanh.pop %v637
  %v646 = vadd.f32 %v638, 1.0
  %v647 = vadd.f32 %v639, 1.0
  %v648 = vadd.f32 %v640, 1.0
  %v649 = vadd.f32 %v641, 1.0
  %v650 = vadd.f32 %v642, 1.0
  %v651 = vadd.f32 %v643, 1.0
  %v652 = vadd.f32 %v644, 1.0
  %v653 = vadd.f32 %v645, 1.0
  %v654 = vmul.f32 %v646, 0.5
  %v655 = vmul.f32 %v647, 0.5
  %v656 = vmul.f32 %v648, 0.5
  %v657 = vmul.f32 %v649, 0.5
  %v658 = vmul.f32 %v650, 0.5
  %v659 = vmul.f32 %v651, 0.5
  %v660 = vmul.f32 %v652, 0.5
  %v661 = vmul.f32 %v653, 0.5
  %v662 = vmul.f32 %v568, %v654
  %v663 = vmul.f32 %v571, %v655
  %v664 = vmul.f32 %v576, %v656
  %v665 = vmul.f32 %v579, %v657
  %v666 = vmul.f32 %v584, %v658
  %v667 = vmul.f32 %v587, %v659
  %v668 = vmul.f32 %v592, %v660
  %v669 = vmul.f32 %v595, %v661
  %v670 = vpack.c.bf16 %v663, %v662
  %v671 = vpack.c.bf16 %v665, %v664
  %v672 = vpack.c.bf16 %v667, %v666
  %v673 = vpack.c.bf16 %v669, %v668
  %v674 = vld [vmem:[%s3] sm:$0xf]
  %v675 = vld [vmem:[%s3 + $0x4] sm:$0xf]
  %v676 = vld [vmem:[%s5] sm:$0xff]
  %v677 = vld [vmem:[%s5 + $0x8] sm:$0xff]
  %v678 = vld [vmem:[%s5 + $0x10] sm:$0xff]
  %v679 = vld [vmem:[%s5 + $0x18] sm:$0xff]
  %v680 = vld [vmem:[%s5 + $0x20] sm:$0xff]
  %v681 = vld [vmem:[%s5 + $0x28] sm:$0xff]
  %v682 = vld [vmem:[%s5 + $0x30] sm:$0xff]
  %v683 = vld [vmem:[%s5 + $0x38] sm:$0xff]
  %v686 = vunpack.c.l.b16 %v674
  %v687 = vunpack.c.l.b16 %v675
  %v688 = vpack.c.b16 %v687, %v686
  %v691 = vsel %vm520, %v670, 0
  %v694 = vsel %vm520, %v671, 0
  %v697 = vsel %vm520, %v672, 0
  %v700 = vsel %vm520, %v673, 0
  %702 = vmatprep.subr.bf16.mxu0 0
  %703 = vmatpush1.bf16.msra.mxu0 0
  %704 = vmatprep.subr.bf16.mxu0 0
  %705 = vmatpush1.bf16.msra.mxu0 0
  %706 = vmatprep.subr.bf16.mxu0 0
  %707 = vmatpush1.bf16.msra.mxu0 0
  %708 = vmatprep.subr.bf16.mxu0 0
  %709 = vmatpush1.bf16.msra.mxu0 0
  %710 = vmatprep.subr.bf16.mxu0 0
  %711 = vmatpush1.bf16.msra.mxu0 0
  %712 = vmatprep.subr.bf16.mxu0 0
  %713 = vmatpush1.bf16.msra.mxu0 0
  %714 = vmatprep.subr.bf16.mxu0 0
  %715 = vmatpush1.bf16.msra.mxu0 0
  %716 = vmatprep.subr.bf16.mxu0 0
  %717 = vmatpush1.bf16.msra.mxu0 %v688
  %718 = vmatprep.subr.bf16.mxu0 0
  %719 = vmatpush2.bf16.msra.mxu0 0
  %720 = vmatprep.subr.bf16.mxu0 0
  %721 = vmatpush2.bf16.msra.mxu0 0
  %722 = vmatprep.subr.bf16.mxu0 0
  %723 = vmatpush2.bf16.msra.mxu0 0
  %724 = vmatprep.subr.bf16.mxu0 0
  %725 = vmatpush2.bf16.msra.mxu0 0
  %726 = vmatprep.subr.bf16.mxu0 0
  %727 = vmatpush2.bf16.msra.mxu0 0
  %728 = vmatprep.subr.bf16.mxu0 0
  %729 = vmatpush2.bf16.msra.mxu0 0
  %730 = vmatprep.subr.bf16.mxu0 0
  %731 = vmatpush2.bf16.msra.mxu0 0
  %732 = vmatprep.subr.bf16.mxu0 0
  %733 = vmatpush2.bf16.msra.mxu0 0
  %734 = vmatprep.mubr.bf16.mxu0 0
  %735 = vmatmul.mubr.bf16.gmra.mxu0 %v691
  %v736 = vpop.f32.mrf.mxu0
  %v737 = vadd.f32 %v676, %v736
  %v738 = vpop.f32.mrf.mxu0
  %v739 = vpop.f32.mrf.mxu0
  %v740 = vadd.f32 %v677, %v739
  %v741 = vpop.f32.mrf.mxu0
  %742 = vmatprep.mubr.bf16.mxu0 0
  %743 = vmatmul.mubr.bf16.gmra.mxu0 %v694
  %v744 = vpop.f32.mrf.mxu0
  %v745 = vadd.f32 %v678, %v744
  %v746 = vpop.f32.mrf.mxu0
  %v747 = vpop.f32.mrf.mxu0
  %v748 = vadd.f32 %v679, %v747
  %v749 = vpop.f32.mrf.mxu0
  %750 = vmatprep.mubr.bf16.mxu0 0
  %751 = vmatmul.mubr.bf16.gmra.mxu0 %v697
  %v752 = vpop.f32.mrf.mxu0
  %v753 = vadd.f32 %v680, %v752
  %v754 = vpop.f32.mrf.mxu0
  %v755 = vpop.f32.mrf.mxu0
  %v756 = vadd.f32 %v681, %v755
  %v757 = vpop.f32.mrf.mxu0
  %758 = vmatprep.mubr.bf16.mxu0 0
  %759 = vmatmul.mubr.bf16.gmra.mxu0 %v700
  %v760 = vpop.f32.mrf.mxu0
  %v761 = vadd.f32 %v682, %v760
  %v762 = vpop.f32.mrf.mxu0
  %v763 = vpop.f32.mrf.mxu0
  %v764 = vadd.f32 %v683, %v763
  %v765 = vpop.f32.mrf.mxu0
  %766 = vdwg.mxu0
  %vm767 = vcmask 261120
  %v768 = vsel %vm767, %v737, -inf
  %v769 = vsel %vm767, %v740, -inf
  %v770 = vsel %vm767, %v745, -inf
  %v771 = vsel %vm767, %v748, -inf
  %v772 = vsel %vm767, %v753, -inf
  %v773 = vmax.f32 %v768, %v772
  %v774 = vsel %vm767, %v756, -inf
  %v775 = vmax.f32 %v769, %v774
  %v776 = vsel %vm767, %v761, -inf
  %v777 = vmax.f32 %v770, %v776
  %v778 = vsel %vm767, %v764, -inf
  %v779 = vmax.f32 %v771, %v778
  %v780 = vmax.f32 %v773, %v775
  %v781 = vmax.f32 %v777, %v779
  %v782 = vmax.f32 %v780, %v781
  %v783 = vrot.slane %v782, 4
  %v784 = vmax.f32 %v782, %v783
  %v785 = vrot.slane %v784, 2
  %v786 = vmax.f32 %v784, %v785
  %v787 = vrot.slane %v786, 1
  %v788 = vmax.f32 %v786, %v787
  %v789 = vsub.f32 %v737, %v788
  %v790 = vsub.f32 %v740, %v788
  %v791 = vsub.f32 %v745, %v788
  %v792 = vsub.f32 %v748, %v788
  %v793 = vsub.f32 %v753, %v788
  %v794 = vsub.f32 %v756, %v788
  %v795 = vsub.f32 %v761, %v788
  %v796 = vsub.f32 %v764, %v788
  %v797 = vmul.f32 %v789, 1.442695
  %v798 = vpow.pop %v797
  %v799 = vmul.f32 %v790, 1.442695
  %v800 = vpow.pop %v799
  %v801 = vmul.f32 %v791, 1.442695
  %v802 = vpow.pop %v801
  %v803 = vmul.f32 %v792, 1.442695
  %v804 = vpow.pop %v803
  %v805 = vmul.f32 %v793, 1.442695
  %v806 = vpow.pop %v805
  %v807 = vmul.f32 %v794, 1.442695
  %v808 = vpow.pop %v807
  %v809 = vmul.f32 %v795, 1.442695
  %v810 = vpow.pop %v809
  %v811 = vmul.f32 %v796, 1.442695
  %v812 = vpow.pop %v811
  %v813 = vsel %vm767, %v798, 0.0
  %v814 = vsel %vm767, %v800, 0.0
  %v815 = vadd.f32 %v813, %v814
  %v816 = vsel %vm767, %v802, 0.0
  %v817 = vadd.f32 %v815, %v816
  %v818 = vsel %vm767, %v804, 0.0
  %v819 = vadd.f32 %v817, %v818
  %v820 = vsel %vm767, %v806, 0.0
  %v821 = vadd.f32 %v819, %v820
  %v822 = vsel %vm767, %v808, 0.0
  %v823 = vadd.f32 %v821, %v822
  %v824 = vsel %vm767, %v810, 0.0
  %v825 = vadd.f32 %v823, %v824
  %v826 = vsel %vm767, %v812, 0.0
  %v827 = vadd.f32 %v825, %v826
  %v828 = vrot.slane %v827, 4
  %v829 = vadd.f32 %v827, %v828
  %v830 = vrot.slane %v829, 2
  %v831 = vadd.f32 %v829, %v830
  %v832 = vrot.slane %v831, 1
  %v833 = vadd.f32 %v831, %v832
  %v834 = vrcp.pop %v833
  %v835 = vmul.f32 %v798, %v834
  %v836 = vmul.f32 %v800, %v834
  %v837 = vmul.f32 %v802, %v834
  %v838 = vmul.f32 %v804, %v834
  %v839 = vmul.f32 %v806, %v834
  %v840 = vmul.f32 %v808, %v834
  %v841 = vmul.f32 %v810, %v834
  %v842 = vmul.f32 %v812, %v834
  %843 = vst.msk [vmem:[%s6] sm:$0xff] %vm767, %v835
  %844 = vst.msk [vmem:[%s6 + $0x8] sm:$0xff] %vm767, %v836
  %845 = vst.msk [vmem:[%s6 + $0x10] sm:$0xff] %vm767, %v837
  %846 = vst.msk [vmem:[%s6 + $0x18] sm:$0xff] %vm767, %v838
  %847 = vst.msk [vmem:[%s6 + $0x20] sm:$0xff] %vm767, %v839
  %848 = vst.msk [vmem:[%s6 + $0x28] sm:$0xff] %vm767, %v840
  %849 = vst.msk [vmem:[%s6 + $0x30] sm:$0xff] %vm767, %v841
  %850 = vst.msk [vmem:[%s6 + $0x38] sm:$0xff] %vm767, %v842
  // Predicated region
  $region26: #{tpu_custom_call.1} parent=0 // pred_check
    _
  $region27: #{tpu_custom_call.1} parent=0 // pred_check_branch
    %852 = sbr.rel (0) target = $region29
  $region28: #{tpu_custom_call.1} parent=0 // pred_region
    _
  $region29: #{tpu_custom_call.1} parent=0 // pred_fallthru
    _
  // Predicated region
  $region30: #{tpu_custom_call.1} parent=0 // pred_check
    _
  $region31: #{tpu_custom_call.1} parent=0 // pred_check_branch
    %854 = sbr.rel (0) target = $region33
  $region32: #{tpu_custom_call.1} parent=0 // pred_region
    _
  $region33: #{tpu_custom_call.1} parent=0 // pred_fallthru
    _

</llo_original>
